<compile_context>
chip_gen: v6e
topology: v6e:2x2x1
jax: 0.10.0
libtpu: 0.0.40
codegen_flags: <defaults>
</compile_context>

<pallas_src>
import math

import jax
import jax.numpy as jnp
from jax.experimental import pallas as pl
from jax.experimental.pallas import tpu as pltpu


def _mlp_kernel(x_ref, w1_ref, b1_ref, w2_ref, b2_ref, o_ref, acc_ref):
    # Grid axes: (row-tile i  [parallel], hidden-tile k [arbitrary/reduction]).
    k = pl.program_id(1)

    @pl.when(k == 0)
    def _():
        acc_ref[...] = jnp.zeros_like(acc_ref)

    # fc1 on this hidden slice: (tm, D_in) @ (D_in, th) -> f32
    h = jnp.dot(x_ref[...], w1_ref[...], preferred_element_type=jnp.float32)
    h = h + b1_ref[...].astype(jnp.float32)

    # SiLU in f32 (EUP handles exp; explicit form to keep lowering simple).
    h = h * (1.0 / (1.0 + jnp.exp(-h)))

    # fc2 partial product, accumulate in f32 scratch: (tm, th) @ (th, D_out)
    acc_ref[...] += jnp.dot(h.astype(w2_ref.dtype), w2_ref[...],
                            preferred_element_type=jnp.float32)

    @pl.when(k == pl.num_programs(1) - 1)
    def _():
        o_ref[...] = (acc_ref[...] + b2_ref[...].astype(jnp.float32)).astype(o_ref.dtype)


def mlp_forward(x, fc1_w, fc1_b, fc2_w, fc2_b, *, block_m=256, block_h=512):
    """Fused MLP forward.

    x     : (..., D_in)
    fc1_w : (H, D_in)   (PyTorch nn.Linear layout),  fc1_b : (H,)
    fc2_w : (D_out, H),                              fc2_b : (D_out,)
    """
    orig_lead = x.shape[:-1]
    d_in = x.shape[-1]
    hidden = fc1_w.shape[0]
    d_out = fc2_w.shape[0]
    m = int(math.prod(orig_lead)) if orig_lead else 1

    x2 = x.reshape(m, d_in)
    w1t = fc1_w.T                      # (D_in, H)
    w2t = fc2_w.T                      # (H, D_out)
    b1r = fc1_b.reshape(1, hidden)
    b2r = fc2_b.reshape(1, d_out)

    # Tile sizes: full extent when small, otherwise aligned tiles.
    tm = m if m <= block_m else block_m
    th = hidden if hidden <= block_h else block_h

    # Zero-pad only when a dim does not divide its tile (zeros are exact here:
    # padded hidden units produce silu(0)=0 and padded fc2 rows contribute 0).
    mp = pl.cdiv(m, tm) * tm
    hp = pl.cdiv(hidden, th) * th
    if mp != m:
        x2 = jnp.pad(x2, ((0, mp - m), (0, 0)))
    if hp != hidden:
        w1t = jnp.pad(w1t, ((0, 0), (0, hp - hidden)))
        b1r = jnp.pad(b1r, ((0, 0), (0, hp - hidden)))
        w2t = jnp.pad(w2t, ((0, hp - hidden), (0, 0)))

    grid = (mp // tm, hp // th)

    itemsize = jnp.dtype(x.dtype).itemsize
    cost = pl.CostEstimate(
        flops=int(2 * mp * d_in * hp + 2 * mp * hp * d_out),
        transcendentals=int(mp * hp),
        bytes_accessed=int((mp * d_in + d_in * hp + hp * d_out + mp * d_out) * itemsize),
    )

    out = pl.pallas_call(
        _mlp_kernel,
        out_shape=jax.ShapeDtypeStruct((mp, d_out), x.dtype),
        grid_spec=pltpu.PrefetchScalarGridSpec(
            num_scalar_prefetch=0,
            grid=grid,
            in_specs=[
                pl.BlockSpec((tm, d_in), lambda i, k: (i, 0)),   # x rows
                pl.BlockSpec((d_in, th), lambda i, k: (0, k)),   # fc1 weight slice
                pl.BlockSpec((1, th), lambda i, k: (0, k)),      # fc1 bias slice
                pl.BlockSpec((th, d_out), lambda i, k: (k, 0)),  # fc2 weight slice
                pl.BlockSpec((1, d_out), lambda i, k: (0, 0)),   # fc2 bias
            ],
            out_specs=pl.BlockSpec((tm, d_out), lambda i, k: (i, 0)),
            scratch_shapes=[pltpu.VMEM((tm, d_out), jnp.float32)],
        ),
        compiler_params=pltpu.CompilerParams(
            dimension_semantics=("parallel", "arbitrary"),
            vmem_limit_bytes=32 * 1024 * 1024,
        ),
        cost_estimate=cost,
    )(x2, w1t, b1r, w2t, b2r)

    if mp != m:
        out = out[:m]
    return out.reshape(*orig_lead, d_out)


def _reference(x, fc1_w, fc1_b, fc2_w, fc2_b):
    """Pure-JAX reference mirroring the PyTorch Mlp.forward (drop=0.0)."""
    h = jnp.dot(x, fc1_w.T) + fc1_b
    h = h * jax.nn.sigmoid(h)           # SiLU
    return jnp.dot(h, fc2_w.T) + fc2_b


if __name__ == "__main__":
    B, S, D_IN = 2, 8, 32
    HIDDEN = 64
    D_OUT = D_IN                                # out_features defaults to in_features

    key = jax.random.PRNGKey(0)
    kx, kw1, kb1, kw2, kb2 = jax.random.split(key, 5)

    x = jax.random.normal(kx, (B, S, D_IN), dtype=jnp.float32)
    fc1_w = jax.random.normal(kw1, (HIDDEN, D_IN), dtype=jnp.float32) * 0.1
    fc1_b = jax.random.normal(kb1, (HIDDEN,), dtype=jnp.float32) * 0.1
    fc2_w = jax.random.normal(kw2, (D_OUT, HIDDEN), dtype=jnp.float32) * 0.1
    fc2_b = jax.random.normal(kb2, (D_OUT,), dtype=jnp.float32) * 0.1

    out = mlp_forward(x, fc1_w, fc1_b, fc2_w, fc2_b)
    out = jax.block_until_ready(out)

    ref = _reference(x, fc1_w, fc1_b, fc2_w, fc2_b)
    assert out.shape == (B, S, D_OUT)
    assert jnp.allclose(out, ref, atol=2e-2, rtol=2e-2)

    print("KERNEL_OK")
</pallas_src>

<mosaic_0001>
module attributes {stable_mosaic.version = 11 : i64} {
  func.func @_mlp_kernel(%arg0: i32, %arg1: i32, %arg2: memref<16x32xf32, #tpu.memory_space<vmem>>, %arg3: memref<32x64xf32, #tpu.memory_space<vmem>>, %arg4: memref<1x64xf32, #tpu.memory_space<vmem>>, %arg5: memref<64x32xf32, #tpu.memory_space<vmem>>, %arg6: memref<1x32xf32, #tpu.memory_space<vmem>>, %arg7: memref<16x32xf32, #tpu.memory_space<vmem>>, %arg8: memref<16x32xf32, #tpu.memory_space<vmem>>) attributes {dimension_semantics = [#tpu.dimension_semantics<parallel>, #tpu.dimension_semantics<arbitrary>], iteration_bounds = array<i64: 1, 1>, scalar_prefetch = 0 : i64, scratch_operands = 1 : i64, tpu.core_type = #tpu.core_type<tc>, window_params = [{transform_indices = @transform_0, window_bounds = array<i64: 16, 32>}, {transform_indices = @transform_1, window_bounds = array<i64: 32, 64>}, {transform_indices = @transform_2, window_bounds = array<i64: 1, 64>}, {transform_indices = @transform_3, window_bounds = array<i64: 64, 32>}, {pipeline_mode = #tpu.pipeline_mode<synchronous>, transform_indices = @transform_4, window_bounds = array<i64: 1, 32>}, {transform_indices = @transform_5, window_bounds = array<i64: 16, 32>}]} {
    %c0_i32 = arith.constant 0 : i32
    %0 = arith.cmpi eq, %arg1, %c0_i32 : i32
    %1 = arith.extui %0 : i1 to i32
    %c0_i32_0 = arith.constant 0 : i32
    %2 = arith.cmpi ne, %1, %c0_i32_0 : i32
    scf.if %2 {
      %cst_18 = arith.constant 0.000000e+00 : f32
      %25 = vector.broadcast %cst_18 : f32 to vector<16x32xf32>
      %c0_19 = arith.constant 0 : index
      %c0_20 = arith.constant 0 : index
      %26 = vector.load %arg8[%c0_19, %c0_20] : memref<16x32xf32, #tpu.memory_space<vmem>>, vector<16x32xf32>
      tpu.vector_store %arg8[%c0_19, %c0_20], %25 {strides = array<i32>} : memref<16x32xf32, #tpu.memory_space<vmem>>, vector<16x32xf32>,
    } else {
    }
    %c0 = arith.constant 0 : index
    %c0_1 = arith.constant 0 : index
    %3 = vector.load %arg2[%c0, %c0_1] : memref<16x32xf32, #tpu.memory_space<vmem>>, vector<16x32xf32>
    %c0_2 = arith.constant 0 : index
    %c0_3 = arith.constant 0 : index
    %4 = vector.load %arg3[%c0_2, %c0_3] : memref<32x64xf32, #tpu.memory_space<vmem>>, vector<32x64xf32>
    %cst = arith.constant dense<0.000000e+00> : vector<16x64xf32>
    %5 = tpu.matmul %3, %4, %cst {dimension_numbers = #tpu.dot_dimension_numbers<[1], [0], [0], [1], [0, 0, 1, 1], [], []>} : vector<16x32xf32>, vector<32x64xf32>, vector<16x64xf32> -> vector<16x64xf32>
    %c0_4 = arith.constant 0 : index
    %c0_5 = arith.constant 0 : index
    %6 = vector.load %arg4[%c0_4, %c0_5] : memref<1x64xf32, #tpu.memory_space<vmem>>, vector<1x64xf32>
    %7 = vector.broadcast %6 : vector<1x64xf32> to vector<16x64xf32>
    %8 = arith.addf %5, %7 : vector<16x64xf32>
    %cst_6 = arith.constant 0.000000e+00 : f32
    %9 = vector.broadcast %cst_6 : f32 to vector<16x64xf32>
    %10 = arith.subf %9, %8 : vector<16x64xf32>
    %11 = math.exp %10 : vector<16x64xf32>
    %cst_7 = arith.constant 1.000000e+00 : f32
    %12 = vector.broadcast %cst_7 : f32 to vector<16x64xf32>
    %13 = arith.addf %12, %11 : vector<16x64xf32>
    %cst_8 = arith.constant 1.000000e+00 : f32
    %14 = vector.broadcast %cst_8 : f32 to vector<16x64xf32>
    %15 = arith.divf %14, %13 : vector<16x64xf32>
    %16 = arith.mulf %8, %15 : vector<16x64xf32>
    %c0_9 = arith.constant 0 : index
    %c0_10 = arith.constant 0 : index
    %17 = vector.load %arg8[%c0_9, %c0_10] : memref<16x32xf32, #tpu.memory_space<vmem>>, vector<16x32xf32>
    %c0_11 = arith.constant 0 : index
    %c0_12 = arith.constant 0 : index
    %18 = vector.load %arg5[%c0_11, %c0_12] : memref<64x32xf32, #tpu.memory_space<vmem>>, vector<64x32xf32>
    %cst_13 = arith.constant dense<0.000000e+00> : vector<16x32xf32>
    %19 = tpu.matmul %16, %18, %cst_13 {dimension_numbers = #tpu.dot_dimension_numbers<[1], [0], [0], [1], [0, 0, 1, 1], [], []>} : vector<16x64xf32>, vector<64x32xf32>, vector<16x32xf32> -> vector<16x32xf32>
    %20 = arith.addf %17, %19 : vector<16x32xf32>
    %c0_14 = arith.constant 0 : index
    %c0_15 = arith.constant 0 : index
    %21 = vector.load %arg8[%c0_14, %c0_15] : memref<16x32xf32, #tpu.memory_space<vmem>>, vector<16x32xf32>
    tpu.vector_store %arg8[%c0_14, %c0_15], %20 {strides = array<i32>} : memref<16x32xf32, #tpu.memory_space<vmem>>, vector<16x32xf32>,
    %c0_i32_16 = arith.constant 0 : i32
    %22 = arith.cmpi eq, %arg1, %c0_i32_16 : i32
    %23 = arith.extui %22 : i1 to i32
    %c0_i32_17 = arith.constant 0 : i32
    %24 = arith.cmpi ne, %23, %c0_i32_17 : i32
    scf.if %24 {
      %c0_18 = arith.constant 0 : index
      %c0_19 = arith.constant 0 : index
      %25 = vector.load %arg8[%c0_18, %c0_19] : memref<16x32xf32, #tpu.memory_space<vmem>>, vector<16x32xf32>
      %c0_20 = arith.constant 0 : index
      %c0_21 = arith.constant 0 : index
      %26 = vector.load %arg6[%c0_20, %c0_21] : memref<1x32xf32, #tpu.memory_space<vmem>>, vector<1x32xf32>
      %27 = vector.broadcast %26 : vector<1x32xf32> to vector<16x32xf32>
      %28 = arith.addf %25, %27 : vector<16x32xf32>
      %c0_22 = arith.constant 0 : index
      %c0_23 = arith.constant 0 : index
      %29 = vector.load %arg7[%c0_22, %c0_23] : memref<16x32xf32, #tpu.memory_space<vmem>>, vector<16x32xf32>
      tpu.vector_store %arg7[%c0_22, %c0_23], %28 {strides = array<i32>} : memref<16x32xf32, #tpu.memory_space<vmem>>, vector<16x32xf32>,
    } else {
    }
    return
  }
  func.func @transform_0(%arg0: i32, %arg1: i32) -> (i32, i32) {
    %c0_i32 = arith.constant 0 : i32
    %c0_i32_0 = arith.constant 0 : i32
    return %arg0, %c0_i32 : i32, i32
  }
  func.func @transform_1(%arg0: i32, %arg1: i32) -> (i32, i32) {
    %c0_i32 = arith.constant 0 : i32
    %c0_i32_0 = arith.constant 0 : i32
    return %c0_i32, %arg1 : i32, i32
  }
  func.func @transform_2(%arg0: i32, %arg1: i32) -> (i32, i32) {
    %c0_i32 = arith.constant 0 : i32
    %c0_i32_0 = arith.constant 0 : i32
    return %c0_i32, %arg1 : i32, i32
  }
  func.func @transform_3(%arg0: i32, %arg1: i32) -> (i32, i32) {
    %c0_i32 = arith.constant 0 : i32
    %c0_i32_0 = arith.constant 0 : i32
    return %arg1, %c0_i32 : i32, i32
  }
  func.func @transform_4(%arg0: i32, %arg1: i32) -> (i32, i32) {
    %c0_i32 = arith.constant 0 : i32
    %c0_i32_0 = arith.constant 0 : i32
    %c0_i32_1 = arith.constant 0 : i32
    return %c0_i32, %c0_i32_0 : i32, i32
  }
  func.func @transform_5(%arg0: i32, %arg1: i32) -> (i32, i32) {
    %c0_i32 = arith.constant 0 : i32
    %c0_i32_0 = arith.constant 0 : i32
    return %arg0, %c0_i32 : i32, i32
  }
}

</mosaic_0001>

<llo_original>
// kernel: tpu_custom_call.1
$region0: #{tpu_custom_call.1}
  #allocation0 [shape = 'u32[]', space=smem, size = 0x4, offset = 0x4, fixed_abs, tag = 'smem constant byte address 0x4 - core index']
  #allocation1 [shape = 'u32[144,128]{1,0:T(1,128)}', space=vmem, size = 0x12000, scoped, tag = 'internal scratch']
  #allocation2 [shape = 'f32[16,32]{1,0:T(8,128)}', space=vmem, size = 0x2000, scoped, tag = 'scratch operand']
  %s0 = inlined_call_operand.vmem [shape: f32[16,32], index: 0, kind: input, shape index: {}]
  %s1 = inlined_call_operand.vmem [shape: f32[32,64], index: 1, kind: input, shape index: {}]
  %s2 = inlined_call_operand.vmem [shape: f32[1,64], index: 2, kind: input, shape index: {}]
  %s3 = inlined_call_operand.vmem [shape: f32[64,32], index: 3, kind: input, shape index: {}]
  %s4 = inlined_call_operand.vmem [shape: f32[1,32], index: 4, kind: input, shape index: {}]
  %s5 = inlined_call_operand.hbm [shape: f32[16,32], index: 5, kind: output, shape index: {}]
  %s6 = sld [smem:[#allocation0]]
  $region38: #{tpu_custom_call.1} parent=0
    _
  %s8 = ssub.s32 1, %s6
  %s9 = scalar_select 0, %s8, %s6
  $region1: #{tpu_custom_call.1} parent=0
    #allocation3 [shape = 'u8[8192]{0}', space=vmem, size = 0x2000, scoped, tag = 'output window, operand 0, single buffered']
    #allocation4 [shape = 's32[1]{0}', space=sflag, size = 0x4, scoped, tag = 'scoped memory for tpu_custom_call.1']
    %10 = vsyncpa [#allocation4], 0
    // Predicated region
    $region2: #{tpu_custom_call.1} parent=1 // pred_check
      _
    $region3: #{tpu_custom_call.1} parent=1 // pred_check_branch
      %12 = sbr.rel (0) target = $region5
    $region4: #{tpu_custom_call.1} parent=1 // pred_region
      _
    $region5: #{tpu_custom_call.1} parent=1 // pred_fallthru
      _
    // Predicated region
    $region6: #{tpu_custom_call.1} parent=1 // pred_check
      _
    $region7: #{tpu_custom_call.1} parent=1 // pred_check_branch
      %14 = sbr.rel (0) target = $region9
    $region8: #{tpu_custom_call.1} parent=1 // pred_region
      _
    $region9: #{tpu_custom_call.1} parent=1 // pred_fallthru
      _
    // Predicated region
    $region10: #{tpu_custom_call.1} parent=1 // pred_check
      _
    $region11: #{tpu_custom_call.1} parent=1 // pred_check_branch
      %16 = sbr.rel (0) target = $region13
    $region12: #{tpu_custom_call.1} parent=1 // pred_region
      _
    $region13: #{tpu_custom_call.1} parent=1 // pred_fallthru
      _
    // Predicated region
    $region14: #{tpu_custom_call.1} parent=1 // pred_check
      _
    $region15: #{tpu_custom_call.1} parent=1 // pred_check_branch
      %18 = sbr.rel (0) target = $region17
    $region16: #{tpu_custom_call.1} parent=1 // pred_region
      _
    $region17: #{tpu_custom_call.1} parent=1 // pred_fallthru
      _
    // Predicated region
    $region18: #{tpu_custom_call.1} parent=1 // pred_check
      _
    $region19: #{tpu_custom_call.1} parent=1 // pred_check_branch
      %20 = sbr.rel (0) target = $region21
    $region20: #{tpu_custom_call.1} parent=1 // pred_region
      _
    $region21: #{tpu_custom_call.1} parent=1 // pred_fallthru
      _
    %p21 = scmp.eq.s32.totalorder 0, 0
    // Predicated region
    $region22: #{tpu_custom_call.1} parent=1 // pred_check
      %p22 = pneg %p21
    $region23: #{tpu_custom_call.1} parent=1 // pred_check_branch
      %24 = sbr.rel (%p22) target = $region25
    $region24: #{tpu_custom_call.1} parent=1 // pred_region
      %vm25 = vcmask 261120
      %26 = vst.msk [vmem:[#allocation2] sm:$0xff] %vm25, 0.0
      %27 = vst.msk [vmem:[#allocation2 + $0x8] sm:$0xff] %vm25, 0.0
    $region25: #{tpu_custom_call.1} parent=1 // pred_fallthru
      _
    %v28 = vld [vmem:[%s0] sm:$0xff]
    %v29 = vld [vmem:[%s0 + $0x8] sm:$0xff]
    %v30 = vld [vmem:[%s1] sm:$0xff]
    %v31 = vld [vmem:[%s1 + $0x8] sm:$0xff]
    %v32 = vld [vmem:[%s1 + $0x10] sm:$0xff]
    %v33 = vld [vmem:[%s1 + $0x18] sm:$0xff]
    %v34 = vld [vmem:[%s2] sm:$0x1]
    %v36 = vlaneseq
    %v37 = vshrl.u32 %v36, 7
    %v38 = vsub.s32 0, %v37
    %v39 = vrot.slane %v34, %v38
    %vm41 = vcmask 261120
    %v43 = vsel %vm41, %v28, 0
    %v46 = vsel %vm41, %v29, 0
    %48 = vmatprep.subr.mxu0 0.0
    %49 = vmatpush1.msra.mxu0 0.0
    %50 = vmatprep.subr.mxu0 0.0
    %51 = vmatpush1.msra.mxu0 0.0
    %52 = vmatprep.subr.mxu0 0.0
    %53 = vmatpush1.msra.mxu0 0.0
    %54 = vmatprep.subr.mxu0 0.0
    %55 = vmatpush1.msra.mxu0 0.0
    %56 = vmatprep.subr.mxu0 0.0
    %57 = vmatpush1.msra.mxu0 0.0
    %58 = vmatprep.subr.mxu0 0.0
    %59 = vmatpush1.msra.mxu0 0.0
    %60 = vmatprep.subr.mxu0 0.0
    %61 = vmatpush1.msra.mxu0 0.0
    %62 = vmatprep.subr.mxu0 0.0
    %63 = vmatpush1.msra.mxu0 0.0
    %64 = vmatprep.subr.mxu0 0.0
    %65 = vmatpush1.msra.mxu0 0.0
    %66 = vmatprep.subr.mxu0 0.0
    %67 = vmatpush1.msra.mxu0 0.0
    %68 = vmatprep.subr.mxu0 0.0
    %69 = vmatpush1.msra.mxu0 0.0
    %70 = vmatprep.subr.mxu0 0.0
    %71 = vmatpush1.msra.mxu0 0.0
    %72 = vmatprep.subr.mxu0 0.0
    %73 = vmatpush1.msra.mxu0 %v33
    %74 = vmatprep.subr.mxu0 0.0
    %75 = vmatpush1.msra.mxu0 %v32
    %76 = vmatprep.subr.mxu0 0.0
    %77 = vmatpush1.msra.mxu0 %v31
    %78 = vmatprep.subr.mxu0 0.0
    %79 = vmatpush1.msra.mxu0 %v30
    %80 = vmatprep.subr.mxu0 0.0
    %81 = vmatpush2.msra.mxu0 0.0
    %82 = vmatprep.subr.mxu0 0.0
    %83 = vmatpush2.msra.mxu0 0.0
    %84 = vmatprep.subr.mxu0 0.0
    %85 = vmatpush2.msra.mxu0 0.0
    %86 = vmatprep.subr.mxu0 0.0
    %87 = vmatpush2.msra.mxu0 0.0
    %88 = vmatprep.subr.mxu0 0.0
    %89 = vmatpush2.msra.mxu0 0.0
    %90 = vmatprep.subr.mxu0 0.0
    %91 = vmatpush2.msra.mxu0 0.0
    %92 = vmatprep.subr.mxu0 0.0
    %93 = vmatpush2.msra.mxu0 0.0
    %94 = vmatprep.subr.mxu0 0.0
    %95 = vmatpush2.msra.mxu0 0.0
    %96 = vmatprep.subr.mxu0 0.0
    %97 = vmatpush2.msra.mxu0 0.0
    %98 = vmatprep.subr.mxu0 0.0
    %99 = vmatpush2.msra.mxu0 0.0
    %100 = vmatprep.subr.mxu0 0.0
    %101 = vmatpush2.msra.mxu0 0.0
    %102 = vmatprep.subr.mxu0 0.0
    %103 = vmatpush2.msra.mxu0 0.0
    %104 = vmatprep.subr.mxu0 0.0
    %105 = vmatpush2.msra.mxu0 0.0
    %106 = vmatprep.subr.mxu0 0.0
    %107 = vmatpush2.msra.mxu0 0.0
    %108 = vmatprep.subr.mxu0 0.0
    %109 = vmatpush2.msra.mxu0 0.0
    %110 = vmatprep.subr.mxu0 0.0
    %111 = vmatpush2.msra.mxu0 0.0
    %112 = vmatprep.mubr.f32.mxu0 0.0
    %113 = vmatmul.mubr.f32.gmra.mxu0 %v43
    %v114 = vpop.f32.mrf.mxu0
    %v115 = vadd.f32 %v39, %v114
    %v116 = vpop.f32.mrf.mxu0
    %117 = vmatprep.mubr.f32.mxu0 0.0
    %118 = vmatmul.mubr.f32.gmra.mxu0 %v46
    %v119 = vpop.f32.mrf.mxu0
    %v120 = vadd.f32 %v39, %v119
    %v121 = vpop.f32.mrf.mxu0
    %122 = vdwg.mxu0
    %v123 = vsub.f32 0.0, %v115
    %v124 = vsub.f32 0.0, %v120
    %v125 = vmul.f32 %v123, 1.442695
    %v126 = vpow.pop %v125
    %v127 = vmul.f32 %v124, 1.442695
    %v128 = vpow.pop %v127
    %v129 = vadd.f32 %v126, 1.0
    %v130 = vadd.f32 %v128, 1.0
    %v131 = vrcp.pop %v129
    %v132 = vmul.f32 1.0, %v131
    %v133 = vrcp.pop %v130
    %v134 = vmul.f32 1.0, %v133
    %v135 = vmul.f32 %v115, %v132
    %v136 = vmul.f32 %v120, %v134
    %v137 = vld [vmem:[#allocation2] sm:$0xff]
    %v138 = vld [vmem:[#allocation2 + $0x8] sm:$0xff]
    %v139 = vld [vmem:[%s3] sm:$0xff]
    %v140 = vld [vmem:[%s3 + $0x8] sm:$0xff]
    %v141 = vld [vmem:[%s3 + $0x10] sm:$0xff]
    %v142 = vld [vmem:[%s3 + $0x18] sm:$0xff]
    %v143 = vld [vmem:[%s3 + $0x20] sm:$0xff]
    %v144 = vld [vmem:[%s3 + $0x28] sm:$0xff]
    %v145 = vld [vmem:[%s3 + $0x30] sm:$0xff]
    %v146 = vld [vmem:[%s3 + $0x38] sm:$0xff]
    %vm147 = vcmask 523264
    %v149 = vsel %vm147, %v135, 0
    %v152 = vsel %vm147, %v136, 0
    %154 = vmatprep.subr.mxu0 0.0
    %155 = vmatpush1.msra.mxu0 0.0
    %156 = vmatprep.subr.mxu0 0.0
    %157 = vmatpush1.msra.mxu0 0.0
    %158 = vmatprep.subr.mxu0 0.0
    %159 = vmatpush1.msra.mxu0 0.0
    %160 = vmatprep.subr.mxu0 0.0
    %161 = vmatpush1.msra.mxu0 0.0
    %162 = vmatprep.subr.mxu0 0.0
    %163 = vmatpush1.msra.mxu0 0.0
    %164 = vmatprep.subr.mxu0 0.0
    %165 = vmatpush1.msra.mxu0 0.0
    %166 = vmatprep.subr.mxu0 0.0
    %167 = vmatpush1.msra.mxu0 0.0
    %168 = vmatprep.subr.mxu0 0.0
    %169 = vmatpush1.msra.mxu0 0.0
    %170 = vmatprep.subr.mxu0 0.0
    %171 = vmatpush1.msra.mxu0 %v146
    %172 = vmatprep.subr.mxu0 0.0
    %173 = vmatpush1.msra.mxu0 %v145
    %174 = vmatprep.subr.mxu0 0.0
    %175 = vmatpush1.msra.mxu0 %v144
    %176 = vmatprep.subr.mxu0 0.0
    %177 = vmatpush1.msra.mxu0 %v143
    %178 = vmatprep.subr.mxu0 0.0
    %179 = vmatpush1.msra.mxu0 %v142
    %180 = vmatprep.subr.mxu0 0.0
    %181 = vmatpush1.msra.mxu0 %v141
    %182 = vmatprep.subr.mxu0 0.0
    %183 = vmatpush1.msra.mxu0 %v140
    %184 = vmatprep.subr.mxu0 0.0
    %185 = vmatpush1.msra.mxu0 %v139
    %186 = vmatprep.subr.mxu0 0.0
    %187 = vmatpush2.msra.mxu0 0.0
    %188 = vmatprep.subr.mxu0 0.0
    %189 = vmatpush2.msra.mxu0 0.0
    %190 = vmatprep.subr.mxu0 0.0
    %191 = vmatpush2.msra.mxu0 0.0
    %192 = vmatprep.subr.mxu0 0.0
    %193 = vmatpush2.msra.mxu0 0.0
    %194 = vmatprep.subr.mxu0 0.0
    %195 = vmatpush2.msra.mxu0 0.0
    %196 = vmatprep.subr.mxu0 0.0
    %197 = vmatpush2.msra.mxu0 0.0
    %198 = vmatprep.subr.mxu0 0.0
    %199 = vmatpush2.msra.mxu0 0.0
    %200 = vmatprep.subr.mxu0 0.0
    %201 = vmatpush2.msra.mxu0 0.0
    %202 = vmatprep.subr.mxu0 0.0
    %203 = vmatpush2.msra.mxu0 0.0
    %204 = vmatprep.subr.mxu0 0.0
    %205 = vmatpush2.msra.mxu0 0.0
    %206 = vmatprep.subr.mxu0 0.0
    %207 = vmatpush2.msra.mxu0 0.0
    %208 = vmatprep.subr.mxu0 0.0
    %209 = vmatpush2.msra.mxu0 0.0
    %210 = vmatprep.subr.mxu0 0.0
    %211 = vmatpush2.msra.mxu0 0.0
    %212 = vmatprep.subr.mxu0 0.0
    %213 = vmatpush2.msra.mxu0 0.0
    %214 = vmatprep.subr.mxu0 0.0
    %215 = vmatpush2.msra.mxu0 0.0
    %216 = vmatprep.subr.mxu0 0.0
    %217 = vmatpush2.msra.mxu0 0.0
    %218 = vmatprep.mubr.f32.mxu0 0.0
    %219 = vmatmul.mubr.f32.gmra.mxu0 %v149
    %v220 = vpop.f32.mrf.mxu0
    %v221 = vadd.f32 0.0, %v220
    %v222 = vpop.f32.mrf.mxu0
    %223 = vmatprep.mubr.f32.mxu0 0.0
    %224 = vmatmul.mubr.f32.gmra.mxu0 %v152
    %v225 = vpop.f32.mrf.mxu0
    %v226 = vadd.f32 0.0, %v225
    %v227 = vpop.f32.mrf.mxu0
    %228 = vdwg.mxu0
    %v229 = vadd.f32 %v137, %v221
    %v230 = vadd.f32 %v138, %v226
    %231 = vst.msk [vmem:[#allocation2] sm:$0xff] %vm41, %v229
    %232 = vst.msk [vmem:[#allocation2 + $0x8] sm:$0xff] %vm41, %v230
    // Predicated region
    $region26: #{tpu_custom_call.1} parent=1 // pred_check
      %p233 = pneg %p21
    $region27: #{tpu_custom_call.1} parent=1 // pred_check_branch
      %235 = sbr.rel (%p233) target = $region29
    $region28: #{tpu_custom_call.1} parent=1 // pred_region
      %v236 = vld [vmem:[#allocation2] sm:$0xff]
      %v237 = vld [vmem:[#allocation2 + $0x8] sm:$0xff]
      %v238 = vld [vmem:[%s4] sm:$0x1]
      %v240 = vlaneseq
      %v241 = vshrl.u32 %v240, 7
      %v242 = vsub.s32 0, %v241
      %v243 = vrot.slane %v238, %v242
      %v245 = vadd.f32 %v236, %v243
      %v246 = vadd.f32 %v237, %v243
      %247 = vst.msk [vmem:[#allocation3] sm:$0xff] %vm41, %v245
      %248 = vst.msk [vmem:[#allocation3 + $0x8] sm:$0xff] %vm41, %v246
    $region29: #{tpu_custom_call.1} parent=1 // pred_fallthru
      _
    // Predicated region
    $region30: #{tpu_custom_call.1} parent=1 // pred_check
      _
    $region31: #{tpu_custom_call.1} parent=1 // pred_check_branch
      %250 = sbr.rel (0) target = $region33
    $region32: #{tpu_custom_call.1} parent=1 // pred_region
      %s252 = ssub.s32 256, 256
      %253 = vsyncadd [#allocation4], %s252
      %s254 = sshll.u32 [#allocation3], 4
      %s255 = int_to_ptr.vmem [resolvable:$true] %s254
      %260 = dma.vmem_to_hbm [thread:$0]  %s255, 256, %s5, [#allocation4], 128, 128, 8
    $region33: #{tpu_custom_call.1} parent=1 // pred_fallthru
      _
    // Predicated region
    $region34: #{tpu_custom_call.1} parent=1 // pred_check
      _
    $region35: #{tpu_custom_call.1} parent=1 // pred_check_branch
      %262 = sbr.rel (0) target = $region37
    $region36: #{tpu_custom_call.1} parent=1 // pred_region
      %263 = dma.done [#allocation4], 256
    $region37: #{tpu_custom_call.1} parent=1 // pred_fallthru
      _
    %264 = vsyncpa [#allocation4], 1

</llo_original>
